<compile_context>
chip_gen: v5e
topology: v5e:2x2
jax: 0.10.0
libtpu: 0.0.40
codegen_flags: <defaults>
</compile_context>

<pallas_src>
import math

import jax
import jax.numpy as jnp
from jax.experimental import pallas as pl
from jax.experimental.pallas import tpu as pltpu

_HALF_LOG_2PI = 0.5 * math.log(2.0 * math.pi)
_LOGP_LANES = 128  # lane-dense log-prob output width


def _actor_dist_kernel(mean_ref, std_ref, act_ref, low_ref, high_ref,
                       scaled_ref, logp_ref):
    # Math in f32 regardless of the HBM dtype (v5e VPU/EUP lack bf16).
    mean = mean_ref[...].astype(jnp.float32)   # (TB, A)
    std = std_ref[...].astype(jnp.float32)     # (TB, A); precondition std > 0
    act = act_ref[...].astype(jnp.float32)     # (TB, A)
    low = low_ref[...]                         # (1, A) f32, resident across grid
    high = high_ref[...]                       # (1, A) f32

    # scaled_mean = 0.5 * (mean + 1) * (high - low) + low
    scaled = 0.5 * (mean + 1.0) * (high - low) + low
    scaled_ref[...] = scaled.astype(scaled_ref.dtype)

    # Independent(Normal(scaled_mean, std), 1).log_prob(actions)
    #   = sum_d [ -0.5*z_d^2 + log(1/std_d) ] - 0.5*A*log(2*pi)
    inv_std = pl.reciprocal(std, approx=False)   # exact; keeps tolerance tight
    z = (act - scaled) * inv_std
    per_dim = jnp.log(inv_std) - 0.5 * (z * z)
    a_dim = mean.shape[-1]
    row_logp = jnp.sum(per_dim, axis=-1, keepdims=True) - a_dim * _HALF_LOG_2PI
    # Broadcast across 128 lanes so the store is a full-lane vst (not vst.msk).
    logp_ref[...] = jnp.broadcast_to(row_logp, logp_ref.shape).astype(logp_ref.dtype)


def actor_distribution(mean, std, actions, action_low, action_high,
                       *, block_rows=512):
    """Returns (scaled_mean, log_prob) with shapes (B, A) and (B, 1).

    Inputs may be f32 or bf16; bf16 is streamed as-is (half the HBM bytes) and
    upcast to f32 inside the kernel. `scaled_mean` is emitted in the input
    dtype, `log_prob` always in f32.
    """
    B, A = mean.shape
    out_dtype = mean.dtype

    low2d = jnp.asarray(action_low, jnp.float32).reshape(1, A)
    high2d = jnp.asarray(action_high, jnp.float32).reshape(1, A)

    # Batch tile: multiple of 8 sublanes, capped at block_rows. At TB=512,
    # A=128 the double-buffered f32 streams are ~2 MiB — far under the 32 MiB
    # scoped-VMEM default, even on v7x. Pad B so the grid divides evenly.
    def _round_up(x, m):
        return ((x + m - 1) // m) * m

    tb = min(block_rows, _round_up(max(B, 1), 8))
    b_pad = _round_up(B, tb)
    if b_pad != B:
        pad = b_pad - B
        mean = jnp.pad(mean, ((0, pad), (0, 0)))
        actions = jnp.pad(actions, ((0, pad), (0, 0)))
        # pad std with 1.0 so log/reciprocal stay finite on the dead rows
        std = jnp.pad(std, ((0, pad), (0, 0)), constant_values=1)
    n_tiles = b_pad // tb

    itemsize = lambda x: jnp.dtype(x.dtype).itemsize
    bytes_accessed = (b_pad * A * (itemsize(mean) + itemsize(std) + itemsize(actions))
                      + b_pad * A * jnp.dtype(out_dtype).itemsize
                      + b_pad * _LOGP_LANES * 4
                      + 2 * A * 4)
    cost = pl.CostEstimate(flops=13 * b_pad * A,
                           transcendentals=2 * b_pad * A,
                           bytes_accessed=int(bytes_accessed))

    def row_spec():
        return pl.BlockSpec((tb, A), lambda i: (i, 0))

    bound_spec = lambda: pl.BlockSpec((1, A), lambda i: (0, 0))  # stays resident

    scaled, logp_wide = pl.pallas_call(
        _actor_dist_kernel,
        grid=(n_tiles,),
        in_specs=[row_spec(), row_spec(), row_spec(), bound_spec(), bound_spec()],
        out_specs=(
            pl.BlockSpec((tb, A), lambda i: (i, 0)),
            pl.BlockSpec((tb, _LOGP_LANES), lambda i: (i, 0)),
        ),
        out_shape=(
            jax.ShapeDtypeStruct((b_pad, A), out_dtype),
            jax.ShapeDtypeStruct((b_pad, _LOGP_LANES), jnp.float32),
        ),
        compiler_params=pltpu.CompilerParams(
            dimension_semantics=("parallel",)),  # megacore split on v7x
        cost_estimate=cost,
    )(mean, std, actions, low2d, high2d)

    return scaled[:B], logp_wide[:B, :1]


def _reference(mean, std, actions, action_low, action_high):
    scaled = 0.5 * (mean + 1.0) * (action_high - action_low) + action_low
    z = (actions - scaled) / std
    per_dim = -0.5 * z * z - jnp.log(std) - 0.5 * jnp.log(2.0 * jnp.pi)
    return scaled, jnp.sum(per_dim, axis=-1, keepdims=True)


if __name__ == "__main__":
    key = jax.random.PRNGKey(0)
    B, A = 64, 128  # small demo shapes; action axis lane-aligned

    k1, k2, k3 = jax.random.split(key, 3)
    mean = jnp.tanh(jax.random.normal(k1, (B, A), dtype=jnp.float32))       # in (-1, 1)
    std = jnp.exp(0.2 * jax.random.normal(k2, (B, A), dtype=jnp.float32))   # > 0
    actions = jax.random.normal(k3, (B, A), dtype=jnp.float32)

    # Deterministic per-dim action bounds (the module's action_low/high arrays).
    action_low = -1.0 - 0.5 * jnp.arange(A, dtype=jnp.float32) / A
    action_high = 1.0 + 0.25 * jnp.arange(A, dtype=jnp.float32) / A

    # f32 path
    scaled, logp = actor_distribution(mean, std, actions, action_low, action_high)
    jax.block_until_ready((scaled, logp))
    ref_scaled, ref_logp = _reference(mean, std, actions,
                                      action_low[None, :], action_high[None, :])
    assert scaled.shape == (B, A) and logp.shape == (B, 1)
    assert jnp.allclose(scaled, ref_scaled, atol=1e-5, rtol=1e-5)
    assert jnp.allclose(logp, ref_logp, atol=1e-3, rtol=1e-5)

    # bf16 HBM-streaming path (in-kernel math stays f32); compare against a
    # reference computed from the same bf16-quantized inputs.
    mean16 = mean.astype(jnp.bfloat16)
    std16 = std.astype(jnp.bfloat16)
    act16 = actions.astype(jnp.bfloat16)
    scaled16, logp16 = actor_distribution(mean16, std16, act16,
                                          action_low, action_high)
    jax.block_until_ready((scaled16, logp16))
    ref_s16, ref_l16 = _reference(mean16.astype(jnp.float32),
                                  std16.astype(jnp.float32),
                                  act16.astype(jnp.float32),
                                  action_low[None, :], action_high[None, :])
    assert scaled16.dtype == jnp.bfloat16
    assert jnp.allclose(scaled16.astype(jnp.float32), ref_s16, atol=2e-2, rtol=1e-2)
    assert jnp.allclose(logp16, ref_l16, atol=5e-3, rtol=1e-5)

    # Odd batch exercises the padding / tiling logic.
    scaled_odd, logp_odd = actor_distribution(mean[:13], std[:13], actions[:13],
                                              action_low, action_high)
    jax.block_until_ready((scaled_odd, logp_odd))
    assert scaled_odd.shape == (13, A) and logp_odd.shape == (13, 1)
    assert jnp.allclose(logp_odd, ref_logp[:13], atol=1e-3, rtol=1e-5)

    # TODO(synk): BaseActor.forward() is abstract (returns None); mean/std are
    # taken as kernel inputs since the base class defines no network.
    print("KERNEL_OK")
</pallas_src>

<mosaic_0001>
module attributes {stable_mosaic.version = 11 : i64} {
  func.func @_actor_dist_kernel(%arg0: i32, %arg1: memref<64x128xf32, #tpu.memory_space<vmem>>, %arg2: memref<64x128xf32, #tpu.memory_space<vmem>>, %arg3: memref<64x128xf32, #tpu.memory_space<vmem>>, %arg4: memref<1x128xf32, #tpu.memory_space<vmem>>, %arg5: memref<1x128xf32, #tpu.memory_space<vmem>>, %arg6: memref<64x128xf32, #tpu.memory_space<vmem>>, %arg7: memref<64x128xf32, #tpu.memory_space<vmem>>) attributes {dimension_semantics = [#tpu.dimension_semantics<parallel>], iteration_bounds = array<i64: 1>, scalar_prefetch = 0 : i64, scratch_operands = 0 : i64, tpu.core_type = #tpu.core_type<tc>, window_params = [{transform_indices = @transform_0, window_bounds = array<i64: 64, 128>}, {transform_indices = @transform_1, window_bounds = array<i64: 64, 128>}, {transform_indices = @transform_2, window_bounds = array<i64: 64, 128>}, {pipeline_mode = #tpu.pipeline_mode<synchronous>, transform_indices = @transform_3, window_bounds = array<i64: 1, 128>}, {pipeline_mode = #tpu.pipeline_mode<synchronous>, transform_indices = @transform_4, window_bounds = array<i64: 1, 128>}, {transform_indices = @transform_5, window_bounds = array<i64: 64, 128>}, {transform_indices = @transform_6, window_bounds = array<i64: 64, 128>}]} {
    %c0 = arith.constant 0 : index
    %c0_0 = arith.constant 0 : index
    %0 = vector.load %arg1[%c0, %c0_0] : memref<64x128xf32, #tpu.memory_space<vmem>>, vector<64x128xf32>
    %c0_1 = arith.constant 0 : index
    %c0_2 = arith.constant 0 : index
    %1 = vector.load %arg2[%c0_1, %c0_2] : memref<64x128xf32, #tpu.memory_space<vmem>>, vector<64x128xf32>
    %c0_3 = arith.constant 0 : index
    %c0_4 = arith.constant 0 : index
    %2 = vector.load %arg3[%c0_3, %c0_4] : memref<64x128xf32, #tpu.memory_space<vmem>>, vector<64x128xf32>
    %c0_5 = arith.constant 0 : index
    %c0_6 = arith.constant 0 : index
    %3 = vector.load %arg4[%c0_5, %c0_6] : memref<1x128xf32, #tpu.memory_space<vmem>>, vector<1x128xf32>
    %c0_7 = arith.constant 0 : index
    %c0_8 = arith.constant 0 : index
    %4 = vector.load %arg5[%c0_7, %c0_8] : memref<1x128xf32, #tpu.memory_space<vmem>>, vector<1x128xf32>
    %cst = arith.constant 1.000000e+00 : f32
    %5 = vector.broadcast %cst : f32 to vector<64x128xf32>
    %6 = arith.addf %0, %5 : vector<64x128xf32>
    %cst_9 = arith.constant 5.000000e-01 : f32
    %7 = vector.broadcast %cst_9 : f32 to vector<64x128xf32>
    %8 = arith.mulf %7, %6 : vector<64x128xf32>
    %9 = arith.subf %4, %3 : vector<1x128xf32>
    %10 = vector.broadcast %9 : vector<1x128xf32> to vector<64x128xf32>
    %11 = arith.mulf %8, %10 : vector<64x128xf32>
    %12 = vector.broadcast %3 : vector<1x128xf32> to vector<64x128xf32>
    %13 = arith.addf %11, %12 : vector<64x128xf32>
    %c0_10 = arith.constant 0 : index
    %c0_11 = arith.constant 0 : index
    %14 = vector.load %arg6[%c0_10, %c0_11] : memref<64x128xf32, #tpu.memory_space<vmem>>, vector<64x128xf32>
    tpu.vector_store %arg6[%c0_10, %c0_11], %13 {strides = array<i32>} : memref<64x128xf32, #tpu.memory_space<vmem>>, vector<64x128xf32>,
    %15 = tpu.reciprocal %1 : vector<64x128xf32> -> vector<64x128xf32>
    %16 = arith.subf %2, %13 : vector<64x128xf32>
    %17 = arith.mulf %16, %15 : vector<64x128xf32>
    %18 = math.log %15 : vector<64x128xf32>
    %19 = arith.mulf %17, %17 : vector<64x128xf32>
    %cst_12 = arith.constant 5.000000e-01 : f32
    %20 = vector.broadcast %cst_12 : f32 to vector<64x128xf32>
    %21 = arith.mulf %20, %19 : vector<64x128xf32>
    %22 = arith.subf %18, %21 : vector<64x128xf32>
    %cst_13 = arith.constant dense<0.000000e+00> : vector<64xf32>
    %23 = vector.multi_reduction <add>, %22, %cst_13 [1] : vector<64x128xf32> to vector<64xf32>
    %24 = vector.shape_cast %23 : vector<64xf32> to vector<64x1xf32>
    %cst_14 = arith.constant 117.62413 : f32
    %25 = vector.broadcast %cst_14 : f32 to vector<64x1xf32>
    %26 = arith.subf %24, %25 : vector<64x1xf32>
    %27 = vector.shape_cast %26 : vector<64x1xf32> to vector<64x1xf32>
    %28 = vector.broadcast %27 : vector<64x1xf32> to vector<64x128xf32>
    %c0_15 = arith.constant 0 : index
    %c0_16 = arith.constant 0 : index
    %29 = vector.load %arg7[%c0_15, %c0_16] : memref<64x128xf32, #tpu.memory_space<vmem>>, vector<64x128xf32>
    tpu.vector_store %arg7[%c0_15, %c0_16], %28 {strides = array<i32>} : memref<64x128xf32, #tpu.memory_space<vmem>>, vector<64x128xf32>,
    return
  }
  func.func @transform_0(%arg0: i32) -> (i32, i32) {
    %c0_i32 = arith.constant 0 : i32
    %c0_i32_0 = arith.constant 0 : i32
    return %arg0, %c0_i32 : i32, i32
  }
  func.func @transform_1(%arg0: i32) -> (i32, i32) {
    %c0_i32 = arith.constant 0 : i32
    %c0_i32_0 = arith.constant 0 : i32
    return %arg0, %c0_i32 : i32, i32
  }
  func.func @transform_2(%arg0: i32) -> (i32, i32) {
    %c0_i32 = arith.constant 0 : i32
    %c0_i32_0 = arith.constant 0 : i32
    return %arg0, %c0_i32 : i32, i32
  }
  func.func @transform_3(%arg0: i32) -> (i32, i32) {
    %c0_i32 = arith.constant 0 : i32
    %c0_i32_0 = arith.constant 0 : i32
    %c0_i32_1 = arith.constant 0 : i32
    return %c0_i32, %c0_i32_0 : i32, i32
  }
  func.func @transform_4(%arg0: i32) -> (i32, i32) {
    %c0_i32 = arith.constant 0 : i32
    %c0_i32_0 = arith.constant 0 : i32
    %c0_i32_1 = arith.constant 0 : i32
    return %c0_i32, %c0_i32_0 : i32, i32
  }
  func.func @transform_5(%arg0: i32) -> (i32, i32) {
    %c0_i32 = arith.constant 0 : i32
    %c0_i32_0 = arith.constant 0 : i32
    return %arg0, %c0_i32 : i32, i32
  }
  func.func @transform_6(%arg0: i32) -> (i32, i32) {
    %c0_i32 = arith.constant 0 : i32
    %c0_i32_0 = arith.constant 0 : i32
    return %arg0, %c0_i32 : i32, i32
  }
}

</mosaic_0001>

<llo_original>
// kernel: tpu_custom_call.1
$region0: #{tpu_custom_call.1}
  #allocation0 [shape = 'u32[]', space=smem, size = 0x4, offset = 0x4, fixed_abs, tag = 'smem constant byte address 0x4 - core index']
  #allocation1 [shape = 'u32[72,128]{1,0:T(1,128)}', space=vmem, size = 0x9000, scoped, tag = 'internal scratch']
  %s0 = inlined_call_operand.hbm [shape: f32[64,128], index: 0, kind: input, shape index: {}]
  %s1 = inlined_call_operand.hbm [shape: f32[64,128], index: 1, kind: input, shape index: {}]
  %s2 = inlined_call_operand.hbm [shape: f32[64,128], index: 2, kind: input, shape index: {}]
  %s3 = inlined_call_operand.vmem [shape: f32[1,128], index: 3, kind: input, shape index: {}]
  %s4 = inlined_call_operand.vmem [shape: f32[1,128], index: 4, kind: input, shape index: {}]
  %s5 = inlined_call_operand.hbm [shape: f32[64,128], index: 5, kind: output, shape index: {0}]
  %s6 = inlined_call_operand.hbm [shape: f32[64,128], index: 6, kind: output, shape index: {1}]
  %7 = xla_tuple %s5, %s6
  %s8 = sld [smem:[#allocation0]]
  $region50: #{tpu_custom_call.1} parent=0
    _
  %s10 = ssub.s32 1, %s8
  %s11 = scalar_select 0, %s10, %s8
  $region1: #{tpu_custom_call.1} parent=0
    #allocation2 [shape = 'u8[32768]{0}', space=vmem, size = 0x8000, scoped, tag = 'input window, operand 0, single buffered']
    #allocation3 [shape = 's32[1]{0}', space=sflag, size = 0x4, scoped, tag = 'scoped memory for tpu_custom_call.1']
    #allocation4 [shape = 's32[1]{0}', space=sflag, size = 0x4, scoped, tag = 'scoped memory for tpu_custom_call.1']
    #allocation5 [shape = 'u8[32768]{0}', space=vmem, size = 0x8000, scoped, tag = 'input window, operand 1, single buffered']
    #allocation6 [shape = 's32[1]{0}', space=sflag, size = 0x4, scoped, tag = 'scoped memory for tpu_custom_call.1']
    #allocation7 [shape = 'u8[32768]{0}', space=vmem, size = 0x8000, scoped, tag = 'input window, operand 2, single buffered']
    #allocation8 [shape = 'u8[32768]{0}', space=vmem, size = 0x8000, scoped, tag = 'output window, operand 0, single buffered']
    #allocation9 [shape = 'u8[32768]{0}', space=vmem, size = 0x8000, scoped, tag = 'output window, operand 1, single buffered']
    #allocation10 [shape = 's32[1]{0}', space=sflag, size = 0x4, scoped, tag = 'scoped memory for tpu_custom_call.1']
    %12 = vsyncpa [#allocation3], 0
    %13 = vsyncpa [#allocation6], 0
    %14 = vsyncpa [#allocation4], 0
    %15 = vsyncpa [#allocation10], 0
    // Predicated region
    $region2: #{tpu_custom_call.1} parent=1 // pred_check
      _
    $region3: #{tpu_custom_call.1} parent=1 // pred_check_branch
      %17 = sbr.rel (0) target = $region5
    $region4: #{tpu_custom_call.1} parent=1 // pred_region
      %19 = vsyncadd [#allocation3], 0
      %s20 = sshll.u32 %s0, 4
      %s21 = int_to_ptr.hbm [resolvable:$true] %s20
      %s22 = sshll.u32 [#allocation2], 4
      %s23 = int_to_ptr.vmem [resolvable:$true] %s22
      %28 = dma.hbm_to_vmem [thread:$0]  %s21, 1024, %s23, [#allocation3], 128, 128, 8
    $region5: #{tpu_custom_call.1} parent=1 // pred_fallthru
      _
    // Predicated region
    $region6: #{tpu_custom_call.1} parent=1 // pred_check
      _
    $region7: #{tpu_custom_call.1} parent=1 // pred_check_branch
      %30 = sbr.rel (0) target = $region9
    $region8: #{tpu_custom_call.1} parent=1 // pred_region
      %32 = vsyncadd [#allocation6], 0
      %s33 = sshll.u32 %s1, 4
      %s34 = int_to_ptr.hbm [resolvable:$true] %s33
      %s35 = sshll.u32 [#allocation5], 4
      %s36 = int_to_ptr.vmem [resolvable:$true] %s35
      %41 = dma.hbm_to_vmem [thread:$0]  %s34, 1024, %s36, [#allocation6], 128, 128, 8
    $region9: #{tpu_custom_call.1} parent=1 // pred_fallthru
      _
    // Predicated region
    $region10: #{tpu_custom_call.1} parent=1 // pred_check
      _
    $region11: #{tpu_custom_call.1} parent=1 // pred_check_branch
      %43 = sbr.rel (0) target = $region13
    $region12: #{tpu_custom_call.1} parent=1 // pred_region
      %45 = vsyncadd [#allocation6], 0
      %s46 = sshll.u32 %s2, 4
      %s47 = int_to_ptr.hbm [resolvable:$true] %s46
      %s48 = sshll.u32 [#allocation7], 4
      %s49 = int_to_ptr.vmem [resolvable:$true] %s48
      %54 = dma.hbm_to_vmem [thread:$0]  %s47, 1024, %s49, [#allocation6], 128, 128, 8
    $region13: #{tpu_custom_call.1} parent=1 // pred_fallthru
      _
    // Predicated region
    $region14: #{tpu_custom_call.1} parent=1 // pred_check
      _
    $region15: #{tpu_custom_call.1} parent=1 // pred_check_branch
      %56 = sbr.rel (0) target = $region17
    $region16: #{tpu_custom_call.1} parent=1 // pred_region
      _
    $region17: #{tpu_custom_call.1} parent=1 // pred_fallthru
      _
    // Predicated region
    $region18: #{tpu_custom_call.1} parent=1 // pred_check
      _
    $region19: #{tpu_custom_call.1} parent=1 // pred_check_branch
      %58 = sbr.rel (0) target = $region21
    $region20: #{tpu_custom_call.1} parent=1 // pred_region
      _
    $region21: #{tpu_custom_call.1} parent=1 // pred_fallthru
      _
    // Predicated region
    $region22: #{tpu_custom_call.1} parent=1 // pred_check
      _
    $region23: #{tpu_custom_call.1} parent=1 // pred_check_branch
      %60 = sbr.rel (0) target = $region25
    $region24: #{tpu_custom_call.1} parent=1 // pred_region
      %62 = dma.done [#allocation3], 1024
    $region25: #{tpu_custom_call.1} parent=1 // pred_fallthru
      _
    // Predicated region
    $region26: #{tpu_custom_call.1} parent=1 // pred_check
      _
    $region27: #{tpu_custom_call.1} parent=1 // pred_check_branch
      %64 = sbr.rel (0) target = $region29
    $region28: #{tpu_custom_call.1} parent=1 // pred_region
      %66 = dma.done [#allocation6], 1024
    $region29: #{tpu_custom_call.1} parent=1 // pred_fallthru
      _
    // Predicated region
    $region30: #{tpu_custom_call.1} parent=1 // pred_check
      _
    $region31: #{tpu_custom_call.1} parent=1 // pred_check_branch
      %68 = sbr.rel (0) target = $region33
    $region32: #{tpu_custom_call.1} parent=1 // pred_region
      %70 = dma.done [#allocation6], 1024
    $region33: #{tpu_custom_call.1} parent=1 // pred_fallthru
      _
    %v71 = vld [vmem:[#allocation2] sm:$0xff]
    %v72 = vld [vmem:[#allocation2 + $0x8] sm:$0xff]
    %v73 = vld [vmem:[#allocation2 + $0x10] sm:$0xff]
    %v74 = vld [vmem:[#allocation2 + $0x18] sm:$0xff]
    %v75 = vld [vmem:[#allocation2 + $0x20] sm:$0xff]
    %v76 = vld [vmem:[#allocation2 + $0x28] sm:$0xff]
    %v77 = vld [vmem:[#allocation2 + $0x30] sm:$0xff]
    %v78 = vld [vmem:[#allocation2 + $0x38] sm:$0xff]
    %v79 = vld [vmem:[#allocation5] sm:$0xff]
    %v80 = vld [vmem:[#allocation5 + $0x8] sm:$0xff]
    %v81 = vld [vmem:[#allocation5 + $0x10] sm:$0xff]
    %v82 = vld [vmem:[#allocation5 + $0x18] sm:$0xff]
    %v83 = vld [vmem:[#allocation5 + $0x20] sm:$0xff]
    %v84 = vld [vmem:[#allocation5 + $0x28] sm:$0xff]
    %v85 = vld [vmem:[#allocation5 + $0x30] sm:$0xff]
    %v86 = vld [vmem:[#allocation5 + $0x38] sm:$0xff]
    %v87 = vld [vmem:[#allocation7] sm:$0xff]
    %v88 = vld [vmem:[#allocation7 + $0x8] sm:$0xff]
    %v89 = vld [vmem:[#allocation7 + $0x10] sm:$0xff]
    %v90 = vld [vmem:[#allocation7 + $0x18] sm:$0xff]
    %v91 = vld [vmem:[#allocation7 + $0x20] sm:$0xff]
    %v92 = vld [vmem:[#allocation7 + $0x28] sm:$0xff]
    %v93 = vld [vmem:[#allocation7 + $0x30] sm:$0xff]
    %v94 = vld [vmem:[#allocation7 + $0x38] sm:$0xff]
    %v95 = vld [vmem:[%s3] sm:$0x1]
    %v96 = vld [vmem:[%s4] sm:$0x1]
    %v97 = vadd.f32 %v71, 1.0
    %v98 = vadd.f32 %v72, 1.0
    %v99 = vadd.f32 %v73, 1.0
    %v100 = vadd.f32 %v74, 1.0
    %v101 = vadd.f32 %v75, 1.0
    %v102 = vadd.f32 %v76, 1.0
    %v103 = vadd.f32 %v77, 1.0
    %v104 = vadd.f32 %v78, 1.0
    %v105 = vmul.f32 %v97, 0.5
    %v106 = vmul.f32 %v98, 0.5
    %v107 = vmul.f32 %v99, 0.5
    %v108 = vmul.f32 %v100, 0.5
    %v109 = vmul.f32 %v101, 0.5
    %v110 = vmul.f32 %v102, 0.5
    %v111 = vmul.f32 %v103, 0.5
    %v112 = vmul.f32 %v104, 0.5
    %v113 = vsub.f32 %v96, %v95
    %v115 = vperm.slane %v113, 0
    %v117 = vmul.f32 %v105, %v115
    %v118 = vmul.f32 %v106, %v115
    %v119 = vmul.f32 %v107, %v115
    %v120 = vmul.f32 %v108, %v115
    %v121 = vmul.f32 %v109, %v115
    %v122 = vmul.f32 %v110, %v115
    %v123 = vmul.f32 %v111, %v115
    %v124 = vmul.f32 %v112, %v115
    %v126 = vperm.slane %v95, 0
    %v128 = vadd.f32 %v117, %v126
    %v129 = vadd.f32 %v118, %v126
    %v130 = vadd.f32 %v119, %v126
    %v131 = vadd.f32 %v120, %v126
    %v132 = vadd.f32 %v121, %v126
    %v133 = vadd.f32 %v122, %v126
    %v134 = vadd.f32 %v123, %v126
    %v135 = vadd.f32 %v124, %v126
    %136 = vst [vmem:[#allocation8] sm:$0xff] %v128
    %137 = vst [vmem:[#allocation8 + $0x8] sm:$0xff] %v129
    %138 = vst [vmem:[#allocation8 + $0x10] sm:$0xff] %v130
    %139 = vst [vmem:[#allocation8 + $0x18] sm:$0xff] %v131
    %140 = vst [vmem:[#allocation8 + $0x20] sm:$0xff] %v132
    %141 = vst [vmem:[#allocation8 + $0x28] sm:$0xff] %v133
    %142 = vst [vmem:[#allocation8 + $0x30] sm:$0xff] %v134
    %143 = vst [vmem:[#allocation8 + $0x38] sm:$0xff] %v135
    %v144 = vrcp.pop %v79
    %v145 = vmul.f32 %v79, %v144
    %v146 = vsub.f32 1.0, %v145
    %v147 = vmul.f32 %v144, %v146
    %v148 = vadd.f32 %v144, %v147
    %vm149 = vweird.f32 %v79
    %vm150 = vweird.f32 %v144
    %vm151 = vmor %vm149, %vm150
    %v152 = vsel %vm151, %v144, %v148
    %v153 = vand.u32 2147483647, %v79
    %vm154 = vcmp.eq.f32.partialorder %v153, 8.507059e+37
    %v155 = vand.u32 %v79, 2147483648
    %v156 = vor.u32 1.1754944e-38, %v155
    %v157 = vsel %vm154, %v156, %v152
    %v158 = vrcp.pop %v80
    %v159 = vmul.f32 %v80, %v158
    %v160 = vsub.f32 1.0, %v159
    %v161 = vmul.f32 %v158, %v160
    %v162 = vadd.f32 %v158, %v161
    %vm163 = vweird.f32 %v80
    %vm164 = vweird.f32 %v158
    %vm165 = vmor %vm163, %vm164
    %v166 = vsel %vm165, %v158, %v162
    %v167 = vand.u32 2147483647, %v80
    %vm168 = vcmp.eq.f32.partialorder %v167, 8.507059e+37
    %v169 = vand.u32 %v80, 2147483648
    %v170 = vor.u32 1.1754944e-38, %v169
    %v171 = vsel %vm168, %v170, %v166
    %v172 = vrcp.pop %v81
    %v173 = vmul.f32 %v81, %v172
    %v174 = vsub.f32 1.0, %v173
    %v175 = vmul.f32 %v172, %v174
    %v176 = vadd.f32 %v172, %v175
    %vm177 = vweird.f32 %v81
    %vm178 = vweird.f32 %v172
    %vm179 = vmor %vm177, %vm178
    %v180 = vsel %vm179, %v172, %v176
    %v181 = vand.u32 2147483647, %v81
    %vm182 = vcmp.eq.f32.partialorder %v181, 8.507059e+37
    %v183 = vand.u32 %v81, 2147483648
    %v184 = vor.u32 1.1754944e-38, %v183
    %v185 = vsel %vm182, %v184, %v180
    %v186 = vrcp.pop %v82
    %v187 = vmul.f32 %v82, %v186
    %v188 = vsub.f32 1.0, %v187
    %v189 = vmul.f32 %v186, %v188
    %v190 = vadd.f32 %v186, %v189
    %vm191 = vweird.f32 %v82
    %vm192 = vweird.f32 %v186
    %vm193 = vmor %vm191, %vm192
    %v194 = vsel %vm193, %v186, %v190
    %v195 = vand.u32 2147483647, %v82
    %vm196 = vcmp.eq.f32.partialorder %v195, 8.507059e+37
    %v197 = vand.u32 %v82, 2147483648
    %v198 = vor.u32 1.1754944e-38, %v197
    %v199 = vsel %vm196, %v198, %v194
    %v200 = vrcp.pop %v83
    %v201 = vmul.f32 %v83, %v200
    %v202 = vsub.f32 1.0, %v201
    %v203 = vmul.f32 %v200, %v202
    %v204 = vadd.f32 %v200, %v203
    %vm205 = vweird.f32 %v83
    %vm206 = vweird.f32 %v200
    %vm207 = vmor %vm205, %vm206
    %v208 = vsel %vm207, %v200, %v204
    %v209 = vand.u32 2147483647, %v83
    %vm210 = vcmp.eq.f32.partialorder %v209, 8.507059e+37
    %v211 = vand.u32 %v83, 2147483648
    %v212 = vor.u32 1.1754944e-38, %v211
    %v213 = vsel %vm210, %v212, %v208
    %v214 = vrcp.pop %v84
    %v215 = vmul.f32 %v84, %v214
    %v216 = vsub.f32 1.0, %v215
    %v217 = vmul.f32 %v214, %v216
    %v218 = vadd.f32 %v214, %v217
    %vm219 = vweird.f32 %v84
    %vm220 = vweird.f32 %v214
    %vm221 = vmor %vm219, %vm220
    %v222 = vsel %vm221, %v214, %v218
    %v223 = vand.u32 2147483647, %v84
    %vm224 = vcmp.eq.f32.partialorder %v223, 8.507059e+37
    %v225 = vand.u32 %v84, 2147483648
    %v226 = vor.u32 1.1754944e-38, %v225
    %v227 = vsel %vm224, %v226, %v222
    %v228 = vrcp.pop %v85
    %v229 = vmul.f32 %v85, %v228
    %v230 = vsub.f32 1.0, %v229
    %v231 = vmul.f32 %v228, %v230
    %v232 = vadd.f32 %v228, %v231
    %vm233 = vweird.f32 %v85
    %vm234 = vweird.f32 %v228
    %vm235 = vmor %vm233, %vm234
    %v236 = vsel %vm235, %v228, %v232
    %v237 = vand.u32 2147483647, %v85
    %vm238 = vcmp.eq.f32.partialorder %v237, 8.507059e+37
    %v239 = vand.u32 %v85, 2147483648
    %v240 = vor.u32 1.1754944e-38, %v239
    %v241 = vsel %vm238, %v240, %v236
    %v242 = vrcp.pop %v86
    %v243 = vmul.f32 %v86, %v242
    %v244 = vsub.f32 1.0, %v243
    %v245 = vmul.f32 %v242, %v244
    %v246 = vadd.f32 %v242, %v245
    %vm247 = vweird.f32 %v86
    %vm248 = vweird.f32 %v242
    %vm249 = vmor %vm247, %vm248
    %v250 = vsel %vm249, %v242, %v246
    %v251 = vand.u32 2147483647, %v86
    %vm252 = vcmp.eq.f32.partialorder %v251, 8.507059e+37
    %v253 = vand.u32 %v86, 2147483648
    %v254 = vor.u32 1.1754944e-38, %v253
    %v255 = vsel %vm252, %v254, %v250
    %v256 = vsub.f32 %v87, %v128
    %v257 = vsub.f32 %v88, %v129
    %v258 = vsub.f32 %v89, %v130
    %v259 = vsub.f32 %v90, %v131
    %v260 = vsub.f32 %v91, %v132
    %v261 = vsub.f32 %v92, %v133
    %v262 = vsub.f32 %v93, %v134
    %v263 = vsub.f32 %v94, %v135
    %v264 = vmul.f32 %v256, %v157
    %v265 = vmul.f32 %v257, %v171
    %v266 = vmul.f32 %v258, %v185
    %v267 = vmul.f32 %v259, %v199
    %v268 = vmul.f32 %v260, %v213
    %v269 = vmul.f32 %v261, %v227
    %v270 = vmul.f32 %v262, %v241
    %v271 = vmul.f32 %v263, %v255
    %v272 = vlog2.pop %v157
    %v273 = vmul.f32 %v272, 0.6931472
    %v274 = vlog2.pop %v171
    %v275 = vmul.f32 %v274, 0.6931472
    %v276 = vlog2.pop %v185
    %v277 = vmul.f32 %v276, 0.6931472
    %v278 = vlog2.pop %v199
    %v279 = vmul.f32 %v278, 0.6931472
    %v280 = vlog2.pop %v213
    %v281 = vmul.f32 %v280, 0.6931472
    %v282 = vlog2.pop %v227
    %v283 = vmul.f32 %v282, 0.6931472
    %v284 = vlog2.pop %v241
    %v285 = vmul.f32 %v284, 0.6931472
    %v286 = vlog2.pop %v255
    %v287 = vmul.f32 %v286, 0.6931472
    %v288 = vmul.f32 %v264, %v264
    %v289 = vmul.f32 %v265, %v265
    %v290 = vmul.f32 %v266, %v266
    %v291 = vmul.f32 %v267, %v267
    %v292 = vmul.f32 %v268, %v268
    %v293 = vmul.f32 %v269, %v269
    %v294 = vmul.f32 %v270, %v270
    %v295 = vmul.f32 %v271, %v271
    %v296 = vmul.f32 %v288, 0.5
    %v297 = vmul.f32 %v289, 0.5
    %v298 = vmul.f32 %v290, 0.5
    %v299 = vmul.f32 %v291, 0.5
    %v300 = vmul.f32 %v292, 0.5
    %v301 = vmul.f32 %v293, 0.5
    %v302 = vmul.f32 %v294, 0.5
    %v303 = vmul.f32 %v295, 0.5
    %v304 = vsub.f32 %v273, %v296
    %v305 = vsub.f32 %v275, %v297
    %v306 = vsub.f32 %v277, %v298
    %v307 = vsub.f32 %v279, %v299
    %v308 = vsub.f32 %v281, %v300
    %v309 = vsub.f32 %v283, %v301
    %v310 = vsub.f32 %v285, %v302
    %v311 = vsub.f32 %v287, %v303
    %312 = vadd.xlane.f32.xlu0 %v304
    %v313 = vpop.xlane.xlu0 %312
    %314 = vadd.xlane.f32.xlu0 %v305
    %v315 = vpop.xlane.xlu0 %314
    %316 = vadd.xlane.f32.xlu0 %v306
    %v317 = vpop.xlane.xlu0 %316
    %318 = vadd.xlane.f32.xlu0 %v307
    %v319 = vpop.xlane.xlu0 %318
    %320 = vadd.xlane.f32.xlu0 %v308
    %v321 = vpop.xlane.xlu0 %320
    %322 = vadd.xlane.f32.xlu0 %v309
    %v323 = vpop.xlane.xlu0 %322
    %324 = vadd.xlane.f32.xlu0 %v310
    %v325 = vpop.xlane.xlu0 %324
    %326 = vadd.xlane.f32.xlu0 %v311
    %v327 = vpop.xlane.xlu0 %326
    %v328 = vsub.f32 %v313, 117.62413
    %v329 = vsub.f32 %v315, 117.62413
    %v330 = vsub.f32 %v317, 117.62413
    %v331 = vsub.f32 %v319, 117.62413
    %v332 = vsub.f32 %v321, 117.62413
    %v333 = vsub.f32 %v323, 117.62413
    %v334 = vsub.f32 %v325, 117.62413
    %v335 = vsub.f32 %v327, 117.62413
    %336 = vst [vmem:[#allocation9] sm:$0xff] %v328
    %337 = vst [vmem:[#allocation9 + $0x8] sm:$0xff] %v329
    %338 = vst [vmem:[#allocation9 + $0x10] sm:$0xff] %v330
    %339 = vst [vmem:[#allocation9 + $0x18] sm:$0xff] %v331
    %340 = vst [vmem:[#allocation9 + $0x20] sm:$0xff] %v332
    %341 = vst [vmem:[#allocation9 + $0x28] sm:$0xff] %v333
    %342 = vst [vmem:[#allocation9 + $0x30] sm:$0xff] %v334
    %343 = vst [vmem:[#allocation9 + $0x38] sm:$0xff] %v335
    // Predicated region
    $region34: #{tpu_custom_call.1} parent=1 // pred_check
      _
    $region35: #{tpu_custom_call.1} parent=1 // pred_check_branch
      %345 = sbr.rel (0) target = $region37
    $region36: #{tpu_custom_call.1} parent=1 // pred_region
      %347 = vsyncadd [#allocation4], 0
      %s348 = sshll.u32 [#allocation8], 4
      %s349 = int_to_ptr.vmem [resolvable:$true] %s348
      %s350 = sshll.u32 %s5, 4
      %s351 = int_to_ptr.hbm [resolvable:$true] %s350
      %356 = dma.vmem_to_hbm [thread:$0]  %s349, 1024, %s351, [#allocation4], 128, 128, 8
    $region37: #{tpu_custom_call.1} parent=1 // pred_fallthru
      _
    // Predicated region
    $region38: #{tpu_custom_call.1} parent=1 // pred_check
      _
    $region39: #{tpu_custom_call.1} parent=1 // pred_check_branch
      %358 = sbr.rel (0) target = $region41
    $region40: #{tpu_custom_call.1} parent=1 // pred_region
      %360 = vsyncadd [#allocation10], 0
      %s361 = sshll.u32 [#allocation9], 4
      %s362 = int_to_ptr.vmem [resolvable:$true] %s361
      %s363 = sshll.u32 %s6, 4
      %s364 = int_to_ptr.hbm [resolvable:$true] %s363
      %369 = dma.vmem_to_hbm [thread:$0]  %s362, 1024, %s364, [#allocation10], 128, 128, 8
    $region41: #{tpu_custom_call.1} parent=1 // pred_fallthru
      _
    // Predicated region
    $region42: #{tpu_custom_call.1} parent=1 // pred_check
      _
    $region43: #{tpu_custom_call.1} parent=1 // pred_check_branch
      %371 = sbr.rel (0) target = $region45
    $region44: #{tpu_custom_call.1} parent=1 // pred_region
      %373 = dma.done [#allocation4], 1024
    $region45: #{tpu_custom_call.1} parent=1 // pred_fallthru
      _
    // Predicated region
    $region46: #{tpu_custom_call.1} parent=1 // pred_check
      _
    $region47: #{tpu_custom_call.1} parent=1 // pred_check_branch
      %375 = sbr.rel (0) target = $region49
    $region48: #{tpu_custom_call.1} parent=1 // pred_region
      %377 = dma.done [#allocation10], 1024
    $region49: #{tpu_custom_call.1} parent=1 // pred_fallthru
      _
    %378 = vsyncpa [#allocation3], 1
    %379 = vsyncpa [#allocation6], 1
    %380 = vsyncpa [#allocation4], 1
    %381 = vsyncpa [#allocation10], 1

</llo_original>
